<compile_context>
chip_gen: v7x
topology: tpu7x:2x2x1
jax: 0.10.0
libtpu: 0.0.40
codegen_flags: <defaults>
</compile_context>

<pallas_src>
import jax
import jax.numpy as jnp
from jax.experimental import pallas as pl
from jax.experimental.pallas import tpu as pltpu


def asp_kernel(x_ref, w1_ref, b1_ref, w2_ref, b2_ref, out_ref):
    """One grid step: BB batches, full time axis, NCT layout (C sublanes, T lanes)."""
    bb_sz, C, _T = x_ref.shape

    # Small, grid-constant parameter blocks; load once per step, reuse per batch.
    w1 = w1_ref[...]          # [D, C]
    b1 = b1_ref[...]          # [D, 1]
    w2 = w2_ref[...]          # [C, D]
    b2 = b2_ref[...]          # [C, 1]

    for bb in range(bb_sz):   # static unroll over the batches in this block
        x = x_ref[bb]                                                      # [C, T]

        # 1x1 convolutions as matmuls with T on lanes (no input transpose).
        h = jnp.tanh(jnp.dot(w1, x, preferred_element_type=jnp.float32) + b1)  # [D, T]
        logits = jnp.dot(w2, h, preferred_element_type=jnp.float32) + b2       # [C, T]

        # Softmax over T with the 1/denominator folded into the pooled stats,
        # so the normalized weights are never materialized (no [C,T] divide).
        m = jnp.max(logits, axis=-1, keepdims=True)                        # [C, 1]
        p = jnp.exp(logits - m)                                            # [C, T]
        s_p = jnp.sum(p, axis=-1, keepdims=True)                           # [C, 1]

        px = p * x                                                         # [C, T]
        s_px = jnp.sum(px, axis=-1, keepdims=True)                         # [C, 1]

        inv = 1.0 / s_p                                                    # [C, 1] (C elems, exact)
        mean = s_px * inv                                                  # [C, 1]

        # dev = w*(x - mean) = (px - mean*p) * inv  -> reuse px, skip (x - mean) pass
        d = px - mean * p                                                  # [C, T]
        var = inv * jnp.sqrt(jnp.sum(d * d, axis=-1, keepdims=True))       # [C, 1]

        # Two slice stores (no in-kernel concat); only tiny [C,1]->[1,C] transposes.
        out_ref[bb : bb + 1, 0:C] = jnp.transpose(mean)
        out_ref[bb : bb + 1, C : 2 * C] = jnp.transpose(var)


def _pick_block_batch(B, max_bb=8):
    """Largest divisor of B that is <= max_bb (so no padded batch rows)."""
    for bb in range(min(B, max_bb), 0, -1):
        if B % bb == 0:
            return bb
    return 1


def tts_attentive_statistics_pooling(x_nct, w1, b1, w2, b2, *, max_block_batch=8):
    """x_nct: [B, C, T] float32 (PyTorch NCT layout, consumed as-is). Returns [B, 2C]."""
    B, C, T = x_nct.shape
    D = w1.shape[0]  # bottleneck

    BB = _pick_block_batch(B, max_block_batch)

    x = x_nct.astype(jnp.float32)                         # no layout change, no transpose
    w1f = w1.astype(jnp.float32)                          # [D, C], used as-is
    w2f = w2.astype(jnp.float32)                          # [C, D], used as-is
    b1c = b1.reshape(D, 1).astype(jnp.float32)            # column bias for [D, T]
    b2c = b2.reshape(C, 1).astype(jnp.float32)            # column bias for [C, T]

    # Explicit VMEM budget: double-buffered x block + parameter blocks + live
    # [C,T]/[D,T] f32 temporaries + double-buffered output block + headroom.
    f32 = 4
    vmem_bytes = (
        2 * BB * C * T * f32                 # x block (double-buffered)
        + 2 * (2 * D * C + D + C) * f32      # W1, W2, b1, b2 (assume 2 buffers each)
        + (4 * C * T + 2 * D * T) * f32      # live intermediates (logits/p, px, d, h, ...)
        + 2 * BB * 2 * C * f32               # output block (double-buffered)
        + (4 << 20)                          # headroom
    )
    vmem_bytes = int(min(max(vmem_bytes, 8 << 20), 100 * 1024 * 1024))

    return pl.pallas_call(
        asp_kernel,
        out_shape=jax.ShapeDtypeStruct((B, 2 * C), jnp.float32),
        grid_spec=pltpu.PrefetchScalarGridSpec(
            num_scalar_prefetch=0,
            grid=(B // BB,),
            in_specs=[
                pl.BlockSpec((BB, C, T), lambda b: (b, 0, 0)),   # x in native NCT layout
                pl.BlockSpec((D, C), lambda b: (0, 0)),          # W1 (grid-constant)
                pl.BlockSpec((D, 1), lambda b: (0, 0)),          # b1
                pl.BlockSpec((C, D), lambda b: (0, 0)),          # W2
                pl.BlockSpec((C, 1), lambda b: (0, 0)),          # b2
            ],
            out_specs=pl.BlockSpec((BB, 2 * C), lambda b: (b, 0)),
        ),
        compiler_params=pltpu.CompilerParams(
            # batch-block axis is independent -> shards across both TCs on v7x
            dimension_semantics=("parallel",),
            vmem_limit_bytes=vmem_bytes,
        ),
    )(x, w1f, b1c, w2f, b2c)


def _reference(x_nct, w1, b1, w2, b2):
    """Pure-JAX reference mirroring the PyTorch forward exactly."""
    h = jnp.tanh(jnp.einsum("dc,bct->bdt", w1, x_nct) + b1[None, :, None])
    logits = jnp.einsum("cd,bdt->bct", w2, h) + b2[None, :, None]
    w = jax.nn.softmax(logits, axis=-1)
    mean = jnp.sum(w * x_nct, axis=-1)
    var = jnp.sqrt(jnp.sum((w * (x_nct - mean[:, :, None])) ** 2, axis=-1))
    return jnp.concatenate([mean, var], axis=-1)


if __name__ == "__main__":
    B, C, D, T = 2, 16, 8, 32  # batch, channels, bottleneck, time

    key = jax.random.PRNGKey(0)
    k_x, k_w1, k_b1, k_w2, k_b2 = jax.random.split(key, 5)

    # Deterministic synthetic parameters (Conv1d weight [out, in, 1] -> squeezed).
    x = jax.random.normal(k_x, (B, C, T), dtype=jnp.float32)
    w1 = jax.random.normal(k_w1, (D, C), dtype=jnp.float32) * 0.2   # Conv1d(C->D)
    b1 = jax.random.normal(k_b1, (D,), dtype=jnp.float32) * 0.1
    w2 = jax.random.normal(k_w2, (C, D), dtype=jnp.float32) * 0.2   # Conv1d(D->C)
    b2 = jax.random.normal(k_b2, (C,), dtype=jnp.float32) * 0.1

    out = tts_attentive_statistics_pooling(x, w1, b1, w2, b2)
    out = jax.block_until_ready(out)

    ref = _reference(x, w1, b1, w2, b2)
    assert out.shape == (B, 2 * C)
    assert jnp.allclose(out, ref, atol=1e-5, rtol=1e-5), "mismatch vs reference"

    print("KERNEL_OK")
</pallas_src>

<mosaic_0001>
module attributes {stable_mosaic.version = 11 : i64} {
  func.func @asp_kernel(%arg0: i32, %arg1: memref<2x16x32xf32, #tpu.memory_space<vmem>>, %arg2: memref<8x16xf32, #tpu.memory_space<vmem>>, %arg3: memref<8x1xf32, #tpu.memory_space<vmem>>, %arg4: memref<16x8xf32, #tpu.memory_space<vmem>>, %arg5: memref<16x1xf32, #tpu.memory_space<vmem>>, %arg6: memref<2x32xf32, #tpu.memory_space<vmem>>) attributes {dimension_semantics = [#tpu.dimension_semantics<parallel>], iteration_bounds = array<i64: 1>, scalar_prefetch = 0 : i64, scratch_operands = 0 : i64, tpu.core_type = #tpu.core_type<tc>, window_params = [{transform_indices = @transform_0, window_bounds = array<i64: 2, 16, 32>}, {pipeline_mode = #tpu.pipeline_mode<synchronous>, transform_indices = @transform_1, window_bounds = array<i64: 8, 16>}, {pipeline_mode = #tpu.pipeline_mode<synchronous>, transform_indices = @transform_2, window_bounds = array<i64: 8, 1>}, {pipeline_mode = #tpu.pipeline_mode<synchronous>, transform_indices = @transform_3, window_bounds = array<i64: 16, 8>}, {pipeline_mode = #tpu.pipeline_mode<synchronous>, transform_indices = @transform_4, window_bounds = array<i64: 16, 1>}, {transform_indices = @transform_5, window_bounds = array<i64: 2, 32>}]} {
    %c0 = arith.constant 0 : index
    %c0_0 = arith.constant 0 : index
    %0 = vector.load %arg2[%c0, %c0_0] : memref<8x16xf32, #tpu.memory_space<vmem>>, vector<8x16xf32>
    %c0_1 = arith.constant 0 : index
    %c0_2 = arith.constant 0 : index
    %1 = vector.load %arg3[%c0_1, %c0_2] : memref<8x1xf32, #tpu.memory_space<vmem>>, vector<8x1xf32>
    %c0_3 = arith.constant 0 : index
    %c0_4 = arith.constant 0 : index
    %2 = vector.load %arg4[%c0_3, %c0_4] : memref<16x8xf32, #tpu.memory_space<vmem>>, vector<16x8xf32>
    %c0_5 = arith.constant 0 : index
    %c0_6 = arith.constant 0 : index
    %3 = vector.load %arg5[%c0_5, %c0_6] : memref<16x1xf32, #tpu.memory_space<vmem>>, vector<16x1xf32>
    %c0_7 = arith.constant 0 : index
    %c0_8 = arith.constant 0 : index
    %c0_9 = arith.constant 0 : index
    %4 = vector.load %arg1[%c0_7, %c0_8, %c0_9] : memref<2x16x32xf32, #tpu.memory_space<vmem>>, vector<1x16x32xf32>
    %5 = vector.shape_cast %4 : vector<1x16x32xf32> to vector<16x32xf32>
    %cst = arith.constant dense<0.000000e+00> : vector<8x32xf32>
    %6 = tpu.matmul %0, %5, %cst {dimension_numbers = #tpu.dot_dimension_numbers<[1], [0], [0], [1], [0, 0, 1, 1], [], []>} : vector<8x16xf32>, vector<16x32xf32>, vector<8x32xf32> -> vector<8x32xf32>
    %7 = vector.broadcast %1 : vector<8x1xf32> to vector<8x32xf32>
    %8 = arith.addf %6, %7 : vector<8x32xf32>
    %9 = math.tanh %8 : vector<8x32xf32>
    %cst_10 = arith.constant dense<0.000000e+00> : vector<16x32xf32>
    %10 = tpu.matmul %2, %9, %cst_10 {dimension_numbers = #tpu.dot_dimension_numbers<[1], [0], [0], [1], [0, 0, 1, 1], [], []>} : vector<16x8xf32>, vector<8x32xf32>, vector<16x32xf32> -> vector<16x32xf32>
    %11 = vector.broadcast %3 : vector<16x1xf32> to vector<16x32xf32>
    %12 = arith.addf %10, %11 : vector<16x32xf32>
    %cst_11 = arith.constant dense<0xFF800000> : vector<16xf32>
    %13 = vector.multi_reduction <maximumf>, %12, %cst_11 [1] : vector<16x32xf32> to vector<16xf32>
    %14 = vector.shape_cast %13 : vector<16xf32> to vector<16x1xf32>
    %15 = vector.broadcast %14 : vector<16x1xf32> to vector<16x32xf32>
    %16 = arith.subf %12, %15 : vector<16x32xf32>
    %17 = math.exp %16 : vector<16x32xf32>
    %cst_12 = arith.constant dense<0.000000e+00> : vector<16xf32>
    %18 = vector.multi_reduction <add>, %17, %cst_12 [1] : vector<16x32xf32> to vector<16xf32>
    %19 = vector.shape_cast %18 : vector<16xf32> to vector<16x1xf32>
    %20 = arith.mulf %17, %5 : vector<16x32xf32>
    %cst_13 = arith.constant dense<0.000000e+00> : vector<16xf32>
    %21 = vector.multi_reduction <add>, %20, %cst_13 [1] : vector<16x32xf32> to vector<16xf32>
    %22 = vector.shape_cast %21 : vector<16xf32> to vector<16x1xf32>
    %cst_14 = arith.constant 1.000000e+00 : f32
    %23 = vector.broadcast %cst_14 : f32 to vector<16x1xf32>
    %24 = arith.divf %23, %19 : vector<16x1xf32>
    %25 = arith.mulf %22, %24 : vector<16x1xf32>
    %26 = vector.broadcast %25 : vector<16x1xf32> to vector<16x32xf32>
    %27 = arith.mulf %26, %17 : vector<16x32xf32>
    %28 = arith.subf %20, %27 : vector<16x32xf32>
    %29 = arith.mulf %28, %28 : vector<16x32xf32>
    %cst_15 = arith.constant dense<0.000000e+00> : vector<16xf32>
    %30 = vector.multi_reduction <add>, %29, %cst_15 [1] : vector<16x32xf32> to vector<16xf32>
    %31 = vector.shape_cast %30 : vector<16xf32> to vector<16x1xf32>
    %32 = math.sqrt %31 : vector<16x1xf32>
    %33 = arith.mulf %24, %32 : vector<16x1xf32>
    %34 = tpu.transpose %25, [1, 0] : vector<16x1xf32> -> vector<1x16xf32>
    %c0_16 = arith.constant 0 : index
    %c0_17 = arith.constant 0 : index
    %35 = vector.load %arg6[%c0_16, %c0_17] : memref<2x32xf32, #tpu.memory_space<vmem>>, vector<1x16xf32>
    tpu.vector_store %arg6[%c0_16, %c0_17], %34 {strides = array<i32>} : memref<2x32xf32, #tpu.memory_space<vmem>>, vector<1x16xf32>,
    %36 = tpu.transpose %33, [1, 0] : vector<16x1xf32> -> vector<1x16xf32>
    %c0_18 = arith.constant 0 : index
    %c16 = arith.constant 16 : index
    %37 = vector.load %arg6[%c0_18, %c16] : memref<2x32xf32, #tpu.memory_space<vmem>>, vector<1x16xf32>
    tpu.vector_store %arg6[%c0_18, %c16], %36 {strides = array<i32>} : memref<2x32xf32, #tpu.memory_space<vmem>>, vector<1x16xf32>,
    %c1 = arith.constant 1 : index
    %c0_19 = arith.constant 0 : index
    %c0_20 = arith.constant 0 : index
    %38 = vector.load %arg1[%c1, %c0_19, %c0_20] : memref<2x16x32xf32, #tpu.memory_space<vmem>>, vector<1x16x32xf32>
    %39 = vector.shape_cast %38 : vector<1x16x32xf32> to vector<16x32xf32>
    %cst_21 = arith.constant dense<0.000000e+00> : vector<8x32xf32>
    %40 = tpu.matmul %0, %39, %cst_21 {dimension_numbers = #tpu.dot_dimension_numbers<[1], [0], [0], [1], [0, 0, 1, 1], [], []>} : vector<8x16xf32>, vector<16x32xf32>, vector<8x32xf32> -> vector<8x32xf32>
    %41 = vector.broadcast %1 : vector<8x1xf32> to vector<8x32xf32>
    %42 = arith.addf %40, %41 : vector<8x32xf32>
    %43 = math.tanh %42 : vector<8x32xf32>
    %cst_22 = arith.constant dense<0.000000e+00> : vector<16x32xf32>
    %44 = tpu.matmul %2, %43, %cst_22 {dimension_numbers = #tpu.dot_dimension_numbers<[1], [0], [0], [1], [0, 0, 1, 1], [], []>} : vector<16x8xf32>, vector<8x32xf32>, vector<16x32xf32> -> vector<16x32xf32>
    %45 = vector.broadcast %3 : vector<16x1xf32> to vector<16x32xf32>
    %46 = arith.addf %44, %45 : vector<16x32xf32>
    %cst_23 = arith.constant dense<0xFF800000> : vector<16xf32>
    %47 = vector.multi_reduction <maximumf>, %46, %cst_23 [1] : vector<16x32xf32> to vector<16xf32>
    %48 = vector.shape_cast %47 : vector<16xf32> to vector<16x1xf32>
    %49 = vector.broadcast %48 : vector<16x1xf32> to vector<16x32xf32>
    %50 = arith.subf %46, %49 : vector<16x32xf32>
    %51 = math.exp %50 : vector<16x32xf32>
    %cst_24 = arith.constant dense<0.000000e+00> : vector<16xf32>
    %52 = vector.multi_reduction <add>, %51, %cst_24 [1] : vector<16x32xf32> to vector<16xf32>
    %53 = vector.shape_cast %52 : vector<16xf32> to vector<16x1xf32>
    %54 = arith.mulf %51, %39 : vector<16x32xf32>
    %cst_25 = arith.constant dense<0.000000e+00> : vector<16xf32>
    %55 = vector.multi_reduction <add>, %54, %cst_25 [1] : vector<16x32xf32> to vector<16xf32>
    %56 = vector.shape_cast %55 : vector<16xf32> to vector<16x1xf32>
    %cst_26 = arith.constant 1.000000e+00 : f32
    %57 = vector.broadcast %cst_26 : f32 to vector<16x1xf32>
    %58 = arith.divf %57, %53 : vector<16x1xf32>
    %59 = arith.mulf %56, %58 : vector<16x1xf32>
    %60 = vector.broadcast %59 : vector<16x1xf32> to vector<16x32xf32>
    %61 = arith.mulf %60, %51 : vector<16x32xf32>
    %62 = arith.subf %54, %61 : vector<16x32xf32>
    %63 = arith.mulf %62, %62 : vector<16x32xf32>
    %cst_27 = arith.constant dense<0.000000e+00> : vector<16xf32>
    %64 = vector.multi_reduction <add>, %63, %cst_27 [1] : vector<16x32xf32> to vector<16xf32>
    %65 = vector.shape_cast %64 : vector<16xf32> to vector<16x1xf32>
    %66 = math.sqrt %65 : vector<16x1xf32>
    %67 = arith.mulf %58, %66 : vector<16x1xf32>
    %68 = tpu.transpose %59, [1, 0] : vector<16x1xf32> -> vector<1x16xf32>
    %c1_28 = arith.constant 1 : index
    %c0_29 = arith.constant 0 : index
    %69 = vector.load %arg6[%c1_28, %c0_29] : memref<2x32xf32, #tpu.memory_space<vmem>>, vector<1x16xf32>
    tpu.vector_store %arg6[%c1_28, %c0_29], %68 {strides = array<i32>} : memref<2x32xf32, #tpu.memory_space<vmem>>, vector<1x16xf32>,
    %70 = tpu.transpose %67, [1, 0] : vector<16x1xf32> -> vector<1x16xf32>
    %c1_30 = arith.constant 1 : index
    %c16_31 = arith.constant 16 : index
    %71 = vector.load %arg6[%c1_30, %c16_31] : memref<2x32xf32, #tpu.memory_space<vmem>>, vector<1x16xf32>
    tpu.vector_store %arg6[%c1_30, %c16_31], %70 {strides = array<i32>} : memref<2x32xf32, #tpu.memory_space<vmem>>, vector<1x16xf32>,
    return
  }
  func.func @transform_0(%arg0: i32) -> (i32, i32, i32) {
    %c0_i32 = arith.constant 0 : i32
    %c0_i32_0 = arith.constant 0 : i32
    %c0_i32_1 = arith.constant 0 : i32
    return %arg0, %c0_i32, %c0_i32_0 : i32, i32, i32
  }
  func.func @transform_1(%arg0: i32) -> (i32, i32) {
    %c0_i32 = arith.constant 0 : i32
    %c0_i32_0 = arith.constant 0 : i32
    %c0_i32_1 = arith.constant 0 : i32
    return %c0_i32, %c0_i32_0 : i32, i32
  }
  func.func @transform_2(%arg0: i32) -> (i32, i32) {
    %c0_i32 = arith.constant 0 : i32
    %c0_i32_0 = arith.constant 0 : i32
    %c0_i32_1 = arith.constant 0 : i32
    return %c0_i32, %c0_i32_0 : i32, i32
  }
  func.func @transform_3(%arg0: i32) -> (i32, i32) {
    %c0_i32 = arith.constant 0 : i32
    %c0_i32_0 = arith.constant 0 : i32
    %c0_i32_1 = arith.constant 0 : i32
    return %c0_i32, %c0_i32_0 : i32, i32
  }
  func.func @transform_4(%arg0: i32) -> (i32, i32) {
    %c0_i32 = arith.constant 0 : i32
    %c0_i32_0 = arith.constant 0 : i32
    %c0_i32_1 = arith.constant 0 : i32
    return %c0_i32, %c0_i32_0 : i32, i32
  }
  func.func @transform_5(%arg0: i32) -> (i32, i32) {
    %c0_i32 = arith.constant 0 : i32
    %c0_i32_0 = arith.constant 0 : i32
    return %arg0, %c0_i32 : i32, i32
  }
}

</mosaic_0001>

<llo_original>
// kernel: tpu_custom_call.1
$region0: #{tpu_custom_call.1}
  #allocation0 [shape = 'u32[]', space=smem, size = 0x4, offset = 0x4, fixed_abs, tag = 'smem constant byte address 0x4 - core index']
  #allocation1 [shape = 'u32[144,128]{1,0:T(1,128)}', space=vmem, size = 0x12000, scoped, tag = 'internal scratch']
  %s0 = inlined_call_operand.vmem [shape: f32[2,16,32], index: 0, kind: input, shape index: {}]
  %s1 = inlined_call_operand.vmem [shape: f32[8,16], index: 1, kind: input, shape index: {}]
  %s2 = inlined_call_operand.vmem [shape: f32[8,1], index: 2, kind: input, shape index: {}]
  %s3 = inlined_call_operand.vmem [shape: f32[16,8], index: 3, kind: input, shape index: {}]
  %s4 = inlined_call_operand.vmem [shape: f32[16,1], index: 4, kind: input, shape index: {}]
  %s5 = inlined_call_operand.hbm [shape: f32[2,32], index: 5, kind: output, shape index: {}]
  %s6 = sld [smem:[#allocation0]]
  $region30: #{tpu_custom_call.1} parent=0
    _
  %s8 = ssub.s32 1, %s6
  %s9 = scalar_select 0, %s8, %s6
  $region1: #{tpu_custom_call.1} parent=0
    #allocation2 [shape = 'u8[1024]{0}', space=vmem, size = 0x400, scoped, tag = 'output window, operand 0, single buffered']
    #allocation3 [shape = 's32[1]{0}', space=sflag, size = 0x4, scoped, tag = 'scoped memory for tpu_custom_call.1']
    %10 = vsyncpa [#allocation3], 0
    // Predicated region
    $region2: #{tpu_custom_call.1} parent=1 // pred_check
      _
    $region3: #{tpu_custom_call.1} parent=1 // pred_check_branch
      %12 = sbr.rel (0) target = $region5
    $region4: #{tpu_custom_call.1} parent=1 // pred_region
      _
    $region5: #{tpu_custom_call.1} parent=1 // pred_fallthru
      _
    // Predicated region
    $region6: #{tpu_custom_call.1} parent=1 // pred_check
      _
    $region7: #{tpu_custom_call.1} parent=1 // pred_check_branch
      %14 = sbr.rel (0) target = $region9
    $region8: #{tpu_custom_call.1} parent=1 // pred_region
      _
    $region9: #{tpu_custom_call.1} parent=1 // pred_fallthru
      _
    // Predicated region
    $region10: #{tpu_custom_call.1} parent=1 // pred_check
      _
    $region11: #{tpu_custom_call.1} parent=1 // pred_check_branch
      %16 = sbr.rel (0) target = $region13
    $region12: #{tpu_custom_call.1} parent=1 // pred_region
      _
    $region13: #{tpu_custom_call.1} parent=1 // pred_fallthru
      _
    // Predicated region
    $region14: #{tpu_custom_call.1} parent=1 // pred_check
      _
    $region15: #{tpu_custom_call.1} parent=1 // pred_check_branch
      %18 = sbr.rel (0) target = $region17
    $region16: #{tpu_custom_call.1} parent=1 // pred_region
      _
    $region17: #{tpu_custom_call.1} parent=1 // pred_fallthru
      _
    // Predicated region
    $region18: #{tpu_custom_call.1} parent=1 // pred_check
      _
    $region19: #{tpu_custom_call.1} parent=1 // pred_check_branch
      %20 = sbr.rel (0) target = $region21
    $region20: #{tpu_custom_call.1} parent=1 // pred_region
      _
    $region21: #{tpu_custom_call.1} parent=1 // pred_fallthru
      _
    %v21 = vld [vmem:[%s1] sm:$0xff]
    %v22 = vld [vmem:[%s2] sm:$0xff]
    %v23 = vld [vmem:[%s3] sm:$0xff]
    %v24 = vld [vmem:[%s3 + $0x8] sm:$0xff]
    %v25 = vld [vmem:[%s4] sm:$0xff]
    %v26 = vld [vmem:[%s4 + $0x8] sm:$0xff]
    %v27 = vld [vmem:[%s0] sm:$0xff]
    %v28 = vld [vmem:[%s0 + $0x8] sm:$0xff]
    %30 = vset.pattern.permute.xlu0 0
    %31 = vperm.xlu0 %30, %v22
    %v32 = vpop.permute.xlu0 %31
    %vm34 = vcmask 130048
    %v36 = vsel %vm34, %v21, 0
    %38 = vmatprep.subr.mxu0 0.0
    %39 = vmatpush1.msra.mxu0 %v27
    %40 = vmatprep.subr.mxu0 0.0
    %41 = vmatpush1.msra.mxu0 %v28
    %42 = vmatprep.subr.mxu0 0.0
    %43 = vmatpush1.msra.mxu0 0.0
    %44 = vmatprep.subr.mxu0 0.0
    %45 = vmatpush1.msra.mxu0 0.0
    %46 = vmatprep.subr.mxu0 0.0
    %47 = vmatpush1.msra.mxu0 0.0
    %48 = vmatprep.subr.mxu0 0.0
    %49 = vmatpush1.msra.mxu0 0.0
    %50 = vmatprep.subr.mxu0 0.0
    %51 = vmatpush1.msra.mxu0 0.0
    %52 = vmatprep.subr.mxu0 0.0
    %53 = vmatpush1.msra.mxu0 0.0
    %54 = vmatprep.subr.mxu0 0.0
    %55 = vmatpush1.msra.mxu0 0.0
    %56 = vmatprep.subr.mxu0 0.0
    %57 = vmatpush1.msra.mxu0 0.0
    %58 = vmatprep.subr.mxu0 0.0
    %59 = vmatpush1.msra.mxu0 0.0
    %60 = vmatprep.subr.mxu0 0.0
    %61 = vmatpush1.msra.mxu0 0.0
    %62 = vmatprep.subr.mxu0 0.0
    %63 = vmatpush1.msra.mxu0 0.0
    %64 = vmatprep.subr.mxu0 0.0
    %65 = vmatpush1.msra.mxu0 0.0
    %66 = vmatprep.subr.mxu0 0.0
    %67 = vmatpush1.msra.mxu0 0.0
    %68 = vmatprep.subr.mxu0 0.0
    %69 = vmatpush1.msra.mxu0 0.0
    %70 = vmatprep.subr.mxu0 0.0
    %71 = vmatpush1.msra.mxu0 0.0
    %72 = vmatprep.subr.mxu0 0.0
    %73 = vmatpush1.msra.mxu0 0.0
    %74 = vmatprep.subr.mxu0 0.0
    %75 = vmatpush1.msra.mxu0 0.0
    %76 = vmatprep.subr.mxu0 0.0
    %77 = vmatpush1.msra.mxu0 0.0
    %78 = vmatprep.subr.mxu0 0.0
    %79 = vmatpush1.msra.mxu0 0.0
    %80 = vmatprep.subr.mxu0 0.0
    %81 = vmatpush1.msra.mxu0 0.0
    %82 = vmatprep.subr.mxu0 0.0
    %83 = vmatpush1.msra.mxu0 0.0
    %84 = vmatprep.subr.mxu0 0.0
    %85 = vmatpush1.msra.mxu0 0.0
    %86 = vmatprep.subr.mxu0 0.0
    %87 = vmatpush1.msra.mxu0 0.0
    %88 = vmatprep.subr.mxu0 0.0
    %89 = vmatpush1.msra.mxu0 0.0
    %90 = vmatprep.subr.mxu0 0.0
    %91 = vmatpush1.msra.mxu0 0.0
    %92 = vmatprep.subr.mxu0 0.0
    %93 = vmatpush1.msra.mxu0 0.0
    %94 = vmatprep.subr.mxu0 0.0
    %95 = vmatpush1.msra.mxu0 0.0
    %96 = vmatprep.subr.mxu0 0.0
    %97 = vmatpush1.msra.mxu0 0.0
    %98 = vmatprep.subr.mxu0 0.0
    %99 = vmatpush1.msra.mxu0 0.0
    %100 = vmatprep.subr.mxu0 0.0
    %101 = vmatpush1.msra.mxu0 0.0
    %102 = vmatprep.mubr.f32.mxu0 0.0
    %103 = vmatmul.mubr.f32.gmra.mrb[0].mxu0 %v36
    %v104 = vpop.f32.mrb[0].mxu0
    %v105 = vadd.f32 %v32, %v104
    %v106 = vpop.f32.mrb[0].mxu0
    %107 = vdwg.mxu0
    %v108 = vtanh.pop %v105
    %110 = vset.pattern.permute.xlu0 0
    %111 = vperm.xlu0 %110, %v25
    %v112 = vpop.permute.xlu0 %111
    %115 = vset.pattern.permute.xlu0 0
    %116 = vperm.xlu0 %115, %v26
    %v117 = vpop.permute.xlu0 %116
    %vm119 = vcmask 64512
    %v121 = vsel %vm119, %v23, 0
    %v124 = vsel %vm119, %v24, 0
    %126 = vmatprep.subr.mxu0 0.0
    %127 = vmatpush1.msra.mxu0 %v108
    %128 = vmatprep.subr.mxu0 0.0
    %129 = vmatpush1.msra.mxu0 0.0
    %130 = vmatprep.subr.mxu0 0.0
    %131 = vmatpush1.msra.mxu0 0.0
    %132 = vmatprep.subr.mxu0 0.0
    %133 = vmatpush1.msra.mxu0 0.0
    %134 = vmatprep.subr.mxu0 0.0
    %135 = vmatpush1.msra.mxu0 0.0
    %136 = vmatprep.subr.mxu0 0.0
    %137 = vmatpush1.msra.mxu0 0.0
    %138 = vmatprep.subr.mxu0 0.0
    %139 = vmatpush1.msra.mxu0 0.0
    %140 = vmatprep.subr.mxu0 0.0
    %141 = vmatpush1.msra.mxu0 0.0
    %142 = vmatprep.subr.mxu0 0.0
    %143 = vmatpush1.msra.mxu0 0.0
    %144 = vmatprep.subr.mxu0 0.0
    %145 = vmatpush1.msra.mxu0 0.0
    %146 = vmatprep.subr.mxu0 0.0
    %147 = vmatpush1.msra.mxu0 0.0
    %148 = vmatprep.subr.mxu0 0.0
    %149 = vmatpush1.msra.mxu0 0.0
    %150 = vmatprep.subr.mxu0 0.0
    %151 = vmatpush1.msra.mxu0 0.0
    %152 = vmatprep.subr.mxu0 0.0
    %153 = vmatpush1.msra.mxu0 0.0
    %154 = vmatprep.subr.mxu0 0.0
    %155 = vmatpush1.msra.mxu0 0.0
    %156 = vmatprep.subr.mxu0 0.0
    %157 = vmatpush1.msra.mxu0 0.0
    %158 = vmatprep.subr.mxu0 0.0
    %159 = vmatpush1.msra.mxu0 0.0
    %160 = vmatprep.subr.mxu0 0.0
    %161 = vmatpush1.msra.mxu0 0.0
    %162 = vmatprep.subr.mxu0 0.0
    %163 = vmatpush1.msra.mxu0 0.0
    %164 = vmatprep.subr.mxu0 0.0
    %165 = vmatpush1.msra.mxu0 0.0
    %166 = vmatprep.subr.mxu0 0.0
    %167 = vmatpush1.msra.mxu0 0.0
    %168 = vmatprep.subr.mxu0 0.0
    %169 = vmatpush1.msra.mxu0 0.0
    %170 = vmatprep.subr.mxu0 0.0
    %171 = vmatpush1.msra.mxu0 0.0
    %172 = vmatprep.subr.mxu0 0.0
    %173 = vmatpush1.msra.mxu0 0.0
    %174 = vmatprep.subr.mxu0 0.0
    %175 = vmatpush1.msra.mxu0 0.0
    %176 = vmatprep.subr.mxu0 0.0
    %177 = vmatpush1.msra.mxu0 0.0
    %178 = vmatprep.subr.mxu0 0.0
    %179 = vmatpush1.msra.mxu0 0.0
    %180 = vmatprep.subr.mxu0 0.0
    %181 = vmatpush1.msra.mxu0 0.0
    %182 = vmatprep.subr.mxu0 0.0
    %183 = vmatpush1.msra.mxu0 0.0
    %184 = vmatprep.subr.mxu0 0.0
    %185 = vmatpush1.msra.mxu0 0.0
    %186 = vmatprep.subr.mxu0 0.0
    %187 = vmatpush1.msra.mxu0 0.0
    %188 = vmatprep.subr.mxu0 0.0
    %189 = vmatpush1.msra.mxu0 0.0
    %190 = vmatprep.mubr.f32.mxu0 0.0
    %191 = vmatmul.mubr.f32.gmra.mrb[0].mxu0 %v121
    %v192 = vpop.f32.mrb[0].mxu0
    %v193 = vadd.f32 %v112, %v192
    %v194 = vpop.f32.mrb[0].mxu0
    %195 = vmatprep.mubr.f32.mxu0 0.0
    %196 = vmatmul.mubr.f32.gmra.mrb[0].mxu0 %v124
    %v197 = vpop.f32.mrb[0].mxu0
    %v198 = vadd.f32 %v117, %v197
    %v199 = vpop.f32.mrb[0].mxu0
    %200 = vdwg.mxu0
    %vm201 = vcmask 261120
    %v202 = vsel %vm201, %v193, -inf
    %203 = vmax.xlane.f32.xlu0 %v202
    %v204 = vpop.xlane.xlu0 %203
    %v205 = vsel %vm201, %v198, -inf
    %206 = vmax.xlane.f32.xlu0 %v205
    %v207 = vpop.xlane.xlu0 %206
    %v208 = vsub.f32 %v193, %v204
    %v209 = vsub.f32 %v198, %v207
    %v210 = vmul.f32 %v208, 1.442695
    %v211 = vpow.pop %v210
    %v212 = vmul.f32 %v209, 1.442695
    %v213 = vpow.pop %v212
    %v214 = vsel %vm201, %v211, 0.0
    %215 = vadd.xlane.f32.xlu0 %v214
    %v216 = vpop.xlane.xlu0 %215
    %v217 = vsel %vm201, %v213, 0.0
    %218 = vadd.xlane.f32.xlu0 %v217
    %v219 = vpop.xlane.xlu0 %218
    %v220 = vmul.f32 %v211, %v27
    %v221 = vmul.f32 %v213, %v28
    %v222 = vsel %vm201, %v220, 0.0
    %223 = vadd.xlane.f32.xlu0 %v222
    %v224 = vpop.xlane.xlu0 %223
    %v225 = vsel %vm201, %v221, 0.0
    %226 = vadd.xlane.f32.xlu0 %v225
    %v227 = vpop.xlane.xlu0 %226
    %v228 = vrcp.pop %v216
    %v229 = vmul.f32 1.0, %v228
    %v230 = vrcp.pop %v219
    %v231 = vmul.f32 1.0, %v230
    %v232 = vmul.f32 %v224, %v229
    %v233 = vmul.f32 %v227, %v231
    %v234 = vmul.f32 %v232, %v211
    %v235 = vmul.f32 %v233, %v213
    %v236 = vsub.f32 %v220, %v234
    %v237 = vsub.f32 %v221, %v235
    %v238 = vmul.f32 %v236, %v236
    %v239 = vmul.f32 %v237, %v237
    %v240 = vsel %vm201, %v238, 0.0
    %241 = vadd.xlane.f32.xlu0 %v240
    %v242 = vpop.xlane.xlu0 %241
    %v243 = vsel %vm201, %v239, 0.0
    %244 = vadd.xlane.f32.xlu0 %v243
    %v245 = vpop.xlane.xlu0 %244
    %v246 = vrsqrt.pop %v242
    %v247 = vmul.f32 %v242, %v246
    %vm248 = vcmp.eq.f32.partialorder %v242, inf
    %v249 = vsel %vm248, %v242, %v247
    %vm250 = vcmp.eq.f32.partialorder %v242, 0.0
    %v251 = vand.u32 %v242, 2147483648
    %v252 = vsel %vm250, %v251, %v249
    %v253 = vrsqrt.pop %v245
    %v254 = vmul.f32 %v245, %v253
    %vm255 = vcmp.eq.f32.partialorder %v245, inf
    %v256 = vsel %vm255, %v245, %v254
    %vm257 = vcmp.eq.f32.partialorder %v245, 0.0
    %v258 = vand.u32 %v245, 2147483648
    %v259 = vsel %vm257, %v258, %v256
    %v260 = vmul.f32 %v229, %v252
    %v261 = vmul.f32 %v231, %v259
    %262 = vxpose.xlu0.b32.start [1/16] %v232, 128
    %263 = vxpose.xlu0.b32.cont [2/16] %v233, 128
    %264 = vxpose.xlu0.b32.cont [3/16] 0.0, 128
    %265 = vxpose.xlu0.b32.cont [4/16] 0.0, 128
    %266 = vxpose.xlu0.b32.cont [5/16] 0.0, 128
    %267 = vxpose.xlu0.b32.cont [6/16] 0.0, 128
    %268 = vxpose.xlu0.b32.cont [7/16] 0.0, 128
    %269 = vxpose.xlu0.b32.cont [8/16] 0.0, 128
    %270 = vxpose.xlu0.b32.cont [9/16] 0.0, 128
    %271 = vxpose.xlu0.b32.cont [10/16] 0.0, 128
    %272 = vxpose.xlu0.b32.cont [11/16] 0.0, 128
    %273 = vxpose.xlu0.b32.cont [12/16] 0.0, 128
    %274 = vxpose.xlu0.b32.cont [13/16] 0.0, 128
    %275 = vxpose.xlu0.b32.cont [14/16] 0.0, 128
    %276 = vxpose.xlu0.b32.cont [15/16] 0.0, 128
    %277 = vxpose.xlu0.b32.end [16/16] 0.0, 128
    %v278 = vpop.trf.xlu0
    %v279 = vpop.trf.xlu0
    %v280 = vpop.trf.xlu0
    %v281 = vpop.trf.xlu0
    %v282 = vpop.trf.xlu0
    %v283 = vpop.trf.xlu0
    %v284 = vpop.trf.xlu0
    %v285 = vpop.trf.xlu0
    %v286 = vpop.trf.xlu0
    %v287 = vpop.trf.xlu0
    %v288 = vpop.trf.xlu0
    %v289 = vpop.trf.xlu0
    %v290 = vpop.trf.xlu0
    %v291 = vpop.trf.xlu0
    %v292 = vpop.trf.xlu0
    %v293 = vpop.trf.xlu0
    %vm294 = vcmask 122880
    %295 = vst.msk [vmem:[#allocation2] sm:$0x1] %vm294, %v278
    %296 = vxpose.xlu0.b32.start [1/16] %v260, 128
    %297 = vxpose.xlu0.b32.cont [2/16] %v261, 128
    %298 = vxpose.xlu0.b32.cont [3/16] 0.0, 128
    %299 = vxpose.xlu0.b32.cont [4/16] 0.0, 128
    %300 = vxpose.xlu0.b32.cont [5/16] 0.0, 128
    %301 = vxpose.xlu0.b32.cont [6/16] 0.0, 128
    %302 = vxpose.xlu0.b32.cont [7/16] 0.0, 128
    %303 = vxpose.xlu0.b32.cont [8/16] 0.0, 128
    %304 = vxpose.xlu0.b32.cont [9/16] 0.0, 128
    %305 = vxpose.xlu0.b32.cont [10/16] 0.0, 128
    %306 = vxpose.xlu0.b32.cont [11/16] 0.0, 128
    %307 = vxpose.xlu0.b32.cont [12/16] 0.0, 128
    %308 = vxpose.xlu0.b32.cont [13/16] 0.0, 128
    %309 = vxpose.xlu0.b32.cont [14/16] 0.0, 128
    %310 = vxpose.xlu0.b32.cont [15/16] 0.0, 128
    %311 = vxpose.xlu0.b32.end [16/16] 0.0, 128
    %v312 = vpop.trf.xlu0
    %v313 = vpop.trf.xlu0
    %v314 = vpop.trf.xlu0
    %v315 = vpop.trf.xlu0
    %v316 = vpop.trf.xlu0
    %v317 = vpop.trf.xlu0
    %v318 = vpop.trf.xlu0
    %v319 = vpop.trf.xlu0
    %v320 = vpop.trf.xlu0
    %v321 = vpop.trf.xlu0
    %v322 = vpop.trf.xlu0
    %v323 = vpop.trf.xlu0
    %v324 = vpop.trf.xlu0
    %v325 = vpop.trf.xlu0
    %v326 = vpop.trf.xlu0
    %v327 = vpop.trf.xlu0
    %329 = vrot.lane.b32.xlu0 %v312, 16
    %v330 = vpop.permute.xlu0 %329
    %vm332 = vcmask 254080
    %333 = vst.msk [vmem:[#allocation2] sm:$0x1] %vm332, %v330
    %s334 = scalar_lea.vmem %s0, 16
    %v335 = vld [vmem:[%s334] sm:$0xff]
    %v336 = vld [vmem:[%s334 + $0x8] sm:$0xff]
    %337 = vmatprep.subr.mxu0 0.0
    %338 = vmatpush1.msra.mxu0 %v335
    %339 = vmatprep.subr.mxu0 0.0
    %340 = vmatpush1.msra.mxu0 %v336
    %341 = vmatprep.subr.mxu0 0.0
    %342 = vmatpush1.msra.mxu0 0.0
    %343 = vmatprep.subr.mxu0 0.0
    %344 = vmatpush1.msra.mxu0 0.0
    %345 = vmatprep.subr.mxu0 0.0
    %346 = vmatpush1.msra.mxu0 0.0
    %347 = vmatprep.subr.mxu0 0.0
    %348 = vmatpush1.msra.mxu0 0.0
    %349 = vmatprep.subr.mxu0 0.0
    %350 = vmatpush1.msra.mxu0 0.0
    %351 = vmatprep.subr.mxu0 0.0
    %352 = vmatpush1.msra.mxu0 0.0
    %353 = vmatprep.subr.mxu0 0.0
    %354 = vmatpush1.msra.mxu0 0.0
    %355 = vmatprep.subr.mxu0 0.0
    %356 = vmatpush1.msra.mxu0 0.0
    %357 = vmatprep.subr.mxu0 0.0
    %358 = vmatpush1.msra.mxu0 0.0
    %359 = vmatprep.subr.mxu0 0.0
    %360 = vmatpush1.msra.mxu0 0.0
    %361 = vmatprep.subr.mxu0 0.0
    %362 = vmatpush1.msra.mxu0 0.0
    %363 = vmatprep.subr.mxu0 0.0
    %364 = vmatpush1.msra.mxu0 0.0
    %365 = vmatprep.subr.mxu0 0.0
    %366 = vmatpush1.msra.mxu0 0.0
    %367 = vmatprep.subr.mxu0 0.0
    %368 = vmatpush1.msra.mxu0 0.0
    %369 = vmatprep.subr.mxu0 0.0
    %370 = vmatpush1.msra.mxu0 0.0
    %371 = vmatprep.subr.mxu0 0.0
    %372 = vmatpush1.msra.mxu0 0.0
    %373 = vmatprep.subr.mxu0 0.0
    %374 = vmatpush1.msra.mxu0 0.0
    %375 = vmatprep.subr.mxu0 0.0
    %376 = vmatpush1.msra.mxu0 0.0
    %377 = vmatprep.subr.mxu0 0.0
    %378 = vmatpush1.msra.mxu0 0.0
    %379 = vmatprep.subr.mxu0 0.0
    %380 = vmatpush1.msra.mxu0 0.0
    %381 = vmatprep.subr.mxu0 0.0
    %382 = vmatpush1.msra.mxu0 0.0
    %383 = vmatprep.subr.mxu0 0.0
    %384 = vmatpush1.msra.mxu0 0.0
    %385 = vmatprep.subr.mxu0 0.0
    %386 = vmatpush1.msra.mxu0 0.0
    %387 = vmatprep.subr.mxu0 0.0
    %388 = vmatpush1.msra.mxu0 0.0
    %389 = vmatprep.subr.mxu0 0.0
    %390 = vmatpush1.msra.mxu0 0.0
    %391 = vmatprep.subr.mxu0 0.0
    %392 = vmatpush1.msra.mxu0 0.0
    %393 = vmatprep.subr.mxu0 0.0
    %394 = vmatpush1.msra.mxu0 0.0
    %395 = vmatprep.subr.mxu0 0.0
    %396 = vmatpush1.msra.mxu0 0.0
    %397 = vmatprep.subr.mxu0 0.0
    %398 = vmatpush1.msra.mxu0 0.0
    %399 = vmatprep.subr.mxu0 0.0
    %400 = vmatpush1.msra.mxu0 0.0
    %401 = vmatprep.mubr.f32.mxu0 0.0
    %402 = vmatmul.mubr.f32.gmra.mrb[0].mxu0 %v36
    %v403 = vpop.f32.mrb[0].mxu0
    %v404 = vadd.f32 %v32, %v403
    %v405 = vpop.f32.mrb[0].mxu0
    %406 = vdwg.mxu0
    %v407 = vtanh.pop %v404
    %408 = vmatprep.subr.mxu0 0.0
    %409 = vmatpush1.msra.mxu0 %v407
    %410 = vmatprep.subr.mxu0 0.0
    %411 = vmatpush1.msra.mxu0 0.0
    %412 = vmatprep.subr.mxu0 0.0
    %413 = vmatpush1.msra.mxu0 0.0
    %414 = vmatprep.subr.mxu0 0.0
    %415 = vmatpush1.msra.mxu0 0.0
    %416 = vmatprep.subr.mxu0 0.0
    %417 = vmatpush1.msra.mxu0 0.0
    %418 = vmatprep.subr.mxu0 0.0
    %419 = vmatpush1.msra.mxu0 0.0
    %420 = vmatprep.subr.mxu0 0.0
    %421 = vmatpush1.msra.mxu0 0.0
    %422 = vmatprep.subr.mxu0 0.0
    %423 = vmatpush1.msra.mxu0 0.0
    %424 = vmatprep.subr.mxu0 0.0
    %425 = vmatpush1.msra.mxu0 0.0
    %426 = vmatprep.subr.mxu0 0.0
    %427 = vmatpush1.msra.mxu0 0.0
    %428 = vmatprep.subr.mxu0 0.0
    %429 = vmatpush1.msra.mxu0 0.0
    %430 = vmatprep.subr.mxu0 0.0
    %431 = vmatpush1.msra.mxu0 0.0
    %432 = vmatprep.subr.mxu0 0.0
    %433 = vmatpush1.msra.mxu0 0.0
    %434 = vmatprep.subr.mxu0 0.0
    %435 = vmatpush1.msra.mxu0 0.0
    %436 = vmatprep.subr.mxu0 0.0
    %437 = vmatpush1.msra.mxu0 0.0
    %438 = vmatprep.subr.mxu0 0.0
    %439 = vmatpush1.msra.mxu0 0.0
    %440 = vmatprep.subr.mxu0 0.0
    %441 = vmatpush1.msra.mxu0 0.0
    %442 = vmatprep.subr.mxu0 0.0
    %443 = vmatpush1.msra.mxu0 0.0
    %444 = vmatprep.subr.mxu0 0.0
    %445 = vmatpush1.msra.mxu0 0.0
    %446 = vmatprep.subr.mxu0 0.0
    %447 = vmatpush1.msra.mxu0 0.0
    %448 = vmatprep.subr.mxu0 0.0
    %449 = vmatpush1.msra.mxu0 0.0
    %450 = vmatprep.subr.mxu0 0.0
    %451 = vmatpush1.msra.mxu0 0.0
    %452 = vmatprep.subr.mxu0 0.0
    %453 = vmatpush1.msra.mxu0 0.0
    %454 = vmatprep.subr.mxu0 0.0
    %455 = vmatpush1.msra.mxu0 0.0
    %456 = vmatprep.subr.mxu0 0.0
    %457 = vmatpush1.msra.mxu0 0.0
    %458 = vmatprep.subr.mxu0 0.0
    %459 = vmatpush1.msra.mxu0 0.0
    %460 = vmatprep.subr.mxu0 0.0
    %461 = vmatpush1.msra.mxu0 0.0
    %462 = vmatprep.subr.mxu0 0.0
    %463 = vmatpush1.msra.mxu0 0.0
    %464 = vmatprep.subr.mxu0 0.0
    %465 = vmatpush1.msra.mxu0 0.0
    %466 = vmatprep.subr.mxu0 0.0
    %467 = vmatpush1.msra.mxu0 0.0
    %468 = vmatprep.subr.mxu0 0.0
    %469 = vmatpush1.msra.mxu0 0.0
    %470 = vmatprep.subr.mxu0 0.0
    %471 = vmatpush1.msra.mxu0 0.0
    %472 = vmatprep.mubr.f32.mxu0 0.0
    %473 = vmatmul.mubr.f32.gmra.mrb[0].mxu0 %v121
    %v474 = vpop.f32.mrb[0].mxu0
    %v475 = vadd.f32 %v112, %v474
    %v476 = vpop.f32.mrb[0].mxu0
    %477 = vmatprep.mubr.f32.mxu0 0.0
    %478 = vmatmul.mubr.f32.gmra.mrb[0].mxu0 %v124
    %v479 = vpop.f32.mrb[0].mxu0
    %v480 = vadd.f32 %v117, %v479
    %v481 = vpop.f32.mrb[0].mxu0
    %482 = vdwg.mxu0
    %v483 = vsel %vm201, %v475, -inf
    %484 = vmax.xlane.f32.xlu0 %v483
    %v485 = vpop.xlane.xlu0 %484
    %v486 = vsel %vm201, %v480, -inf
    %487 = vmax.xlane.f32.xlu0 %v486
    %v488 = vpop.xlane.xlu0 %487
    %v489 = vsub.f32 %v475, %v485
    %v490 = vsub.f32 %v480, %v488
    %v491 = vmul.f32 %v489, 1.442695
    %v492 = vpow.pop %v491
    %v493 = vmul.f32 %v490, 1.442695
    %v494 = vpow.pop %v493
    %v495 = vsel %vm201, %v492, 0.0
    %496 = vadd.xlane.f32.xlu0 %v495
    %v497 = vpop.xlane.xlu0 %496
    %v498 = vsel %vm201, %v494, 0.0
    %499 = vadd.xlane.f32.xlu0 %v498
    %v500 = vpop.xlane.xlu0 %499
    %v501 = vmul.f32 %v492, %v335
    %v502 = vmul.f32 %v494, %v336
    %v503 = vsel %vm201, %v501, 0.0
    %504 = vadd.xlane.f32.xlu0 %v503
    %v505 = vpop.xlane.xlu0 %504
    %v506 = vsel %vm201, %v502, 0.0
    %507 = vadd.xlane.f32.xlu0 %v506
    %v508 = vpop.xlane.xlu0 %507
    %v509 = vrcp.pop %v497
    %v510 = vmul.f32 1.0, %v509
    %v511 = vrcp.pop %v500
    %v512 = vmul.f32 1.0, %v511
    %v513 = vmul.f32 %v505, %v510
    %v514 = vmul.f32 %v508, %v512
    %v515 = vmul.f32 %v513, %v492
    %v516 = vmul.f32 %v514, %v494
    %v517 = vsub.f32 %v501, %v515
    %v518 = vsub.f32 %v502, %v516
    %v519 = vmul.f32 %v517, %v517
    %v520 = vmul.f32 %v518, %v518
    %v521 = vsel %vm201, %v519, 0.0
    %522 = vadd.xlane.f32.xlu0 %v521
    %v523 = vpop.xlane.xlu0 %522
    %v524 = vsel %vm201, %v520, 0.0
    %525 = vadd.xlane.f32.xlu0 %v524
    %v526 = vpop.xlane.xlu0 %525
    %v527 = vrsqrt.pop %v523
    %v528 = vmul.f32 %v523, %v527
    %vm529 = vcmp.eq.f32.partialorder %v523, inf
    %v530 = vsel %vm529, %v523, %v528
    %vm531 = vcmp.eq.f32.partialorder %v523, 0.0
    %v532 = vand.u32 %v523, 2147483648
    %v533 = vsel %vm531, %v532, %v530
    %v534 = vrsqrt.pop %v526
    %v535 = vmul.f32 %v526, %v534
    %vm536 = vcmp.eq.f32.partialorder %v526, inf
    %v537 = vsel %vm536, %v526, %v535
    %vm538 = vcmp.eq.f32.partialorder %v526, 0.0
    %v539 = vand.u32 %v526, 2147483648
    %v540 = vsel %vm538, %v539, %v537
    %v541 = vmul.f32 %v510, %v533
    %v542 = vmul.f32 %v512, %v540
    %543 = vxpose.xlu0.b32.start [1/16] %v513, 128
    %544 = vxpose.xlu0.b32.cont [2/16] %v514, 128
    %545 = vxpose.xlu0.b32.cont [3/16] 0.0, 128
    %546 = vxpose.xlu0.b32.cont [4/16] 0.0, 128
    %547 = vxpose.xlu0.b32.cont [5/16] 0.0, 128
    %548 = vxpose.xlu0.b32.cont [6/16] 0.0, 128
    %549 = vxpose.xlu0.b32.cont [7/16] 0.0, 128
    %550 = vxpose.xlu0.b32.cont [8/16] 0.0, 128
    %551 = vxpose.xlu0.b32.cont [9/16] 0.0, 128
    %552 = vxpose.xlu0.b32.cont [10/16] 0.0, 128
    %553 = vxpose.xlu0.b32.cont [11/16] 0.0, 128
    %554 = vxpose.xlu0.b32.cont [12/16] 0.0, 128
    %555 = vxpose.xlu0.b32.cont [13/16] 0.0, 128
    %556 = vxpose.xlu0.b32.cont [14/16] 0.0, 128
    %557 = vxpose.xlu0.b32.cont [15/16] 0.0, 128
    %558 = vxpose.xlu0.b32.end [16/16] 0.0, 128
    %v559 = vpop.trf.xlu0
    %v560 = vpop.trf.xlu0
    %v561 = vpop.trf.xlu0
    %v562 = vpop.trf.xlu0
    %v563 = vpop.trf.xlu0
    %v564 = vpop.trf.xlu0
    %v565 = vpop.trf.xlu0
    %v566 = vpop.trf.xlu0
    %v567 = vpop.trf.xlu0
    %v568 = vpop.trf.xlu0
    %v569 = vpop.trf.xlu0
    %v570 = vpop.trf.xlu0
    %v571 = vpop.trf.xlu0
    %v572 = vpop.trf.xlu0
    %v573 = vpop.trf.xlu0
    %v574 = vpop.trf.xlu0
    %575 = vst.msk [vmem:[#allocation2 + $0x1] sm:$0x1] %vm294, %v559
    %576 = vxpose.xlu0.b32.start [1/16] %v541, 128
    %577 = vxpose.xlu0.b32.cont [2/16] %v542, 128
    %578 = vxpose.xlu0.b32.cont [3/16] 0.0, 128
    %579 = vxpose.xlu0.b32.cont [4/16] 0.0, 128
    %580 = vxpose.xlu0.b32.cont [5/16] 0.0, 128
    %581 = vxpose.xlu0.b32.cont [6/16] 0.0, 128
    %582 = vxpose.xlu0.b32.cont [7/16] 0.0, 128
    %583 = vxpose.xlu0.b32.cont [8/16] 0.0, 128
    %584 = vxpose.xlu0.b32.cont [9/16] 0.0, 128
    %585 = vxpose.xlu0.b32.cont [10/16] 0.0, 128
    %586 = vxpose.xlu0.b32.cont [11/16] 0.0, 128
    %587 = vxpose.xlu0.b32.cont [12/16] 0.0, 128
    %588 = vxpose.xlu0.b32.cont [13/16] 0.0, 128
    %589 = vxpose.xlu0.b32.cont [14/16] 0.0, 128
    %590 = vxpose.xlu0.b32.cont [15/16] 0.0, 128
    %591 = vxpose.xlu0.b32.end [16/16] 0.0, 128
    %v592 = vpop.trf.xlu0
    %v593 = vpop.trf.xlu0
    %v594 = vpop.trf.xlu0
    %v595 = vpop.trf.xlu0
    %v596 = vpop.trf.xlu0
    %v597 = vpop.trf.xlu0
    %v598 = vpop.trf.xlu0
    %v599 = vpop.trf.xlu0
    %v600 = vpop.trf.xlu0
    %v601 = vpop.trf.xlu0
    %v602 = vpop.trf.xlu0
    %v603 = vpop.trf.xlu0
    %v604 = vpop.trf.xlu0
    %v605 = vpop.trf.xlu0
    %v606 = vpop.trf.xlu0
    %v607 = vpop.trf.xlu0
    %609 = vrot.lane.b32.xlu0 %v592, 16
    %v610 = vpop.permute.xlu0 %609
    %612 = vst.msk [vmem:[#allocation2 + $0x1] sm:$0x1] %vm332, %v610
    // Predicated region
    $region22: #{tpu_custom_call.1} parent=1 // pred_check
      _
    $region23: #{tpu_custom_call.1} parent=1 // pred_check_branch
      %614 = sbr.rel (0) target = $region25
    $region24: #{tpu_custom_call.1} parent=1 // pred_region
      %s616 = ssub.s32 32, 32
      %617 = vsyncadd [#allocation3], %s616
      %s619 = sshll.u32 [#allocation2], 4
      %s620 = int_to_ptr.vmem [resolvable:$true] %s619
      %622 = dma.vmem_to_hbm [thread:$0]  %s620, 32, %s5, [#allocation3]
    $region25: #{tpu_custom_call.1} parent=1 // pred_fallthru
      _
    // Predicated region
    $region26: #{tpu_custom_call.1} parent=1 // pred_check
      _
    $region27: #{tpu_custom_call.1} parent=1 // pred_check_branch
      %624 = sbr.rel (0) target = $region29
    $region28: #{tpu_custom_call.1} parent=1 // pred_region
      %625 = dma.done [#allocation3], 32
    $region29: #{tpu_custom_call.1} parent=1 // pred_fallthru
      _
    %626 = vsyncpa [#allocation3], 1

</llo_original>
